<compile_context>
chip_gen: v6e
topology: v6e:2x2x1
jax: 0.10.0
libtpu: 0.0.40
codegen_flags: <defaults>
</compile_context>

<pallas_src>
import jax
import jax.numpy as jnp
from jax.experimental import pallas as pl
from jax.experimental.pallas import tpu as pltpu

LANE = 128     # TPU vreg lane width
SUBLANE = 8    # f32 sublane count


def _round_up(x, m):
    return (x + m - 1) // m * m


def _cdiv(a, b):
    return -(-a // b)


def qnet_kernel(x_ref, w1_ref, b1_ref, w2_ref, b2_ref, w3t_ref, b3t_ref, o_ref):
    # Layer 1: bf16 x bf16 -> f32 on the MXU; bias-add + ReLU in f32 on the VPU.
    h1 = jnp.dot(x_ref[...], w1_ref[...], preferred_element_type=jnp.float32) + b1_ref[...]
    h1 = jnp.maximum(h1, 0.0)
    # Layer 2 (hidden widths padded to 128 -> lane-dense vregs / full MXU passes).
    h2 = jnp.dot(h1.astype(jnp.bfloat16), w2_ref[...], preferred_element_type=jnp.float32) + b2_ref[...]
    h2 = jnp.maximum(h2, 0.0)
    # Layer 3 produced TRANSPOSED: out_t = w3^T @ h2^T  -> (out_pad8, tile_b).
    # Batch sits on the lane axis -> compact AND lane-dense output stores (the output stream
    # was the dominant HBM traffic).  Transpose is done in f32 (canonical XLU path), then cast.
    h2t = h2.T.astype(jnp.bfloat16)                                   # (128, tile_b)
    out_t = jnp.dot(w3t_ref[...], h2t, preferred_element_type=jnp.float32) + b3t_ref[...]
    o_ref[...] = out_t


def prepare_params(params):
    """Zero-pad hidden widths to 128 lanes, pre-transpose layer 3, cast weights to bf16.

    Call once at init / after each optimizer step and pass the result to qnetwork_forward
    via `prepared_params=` to keep this out of the per-step path.
    """
    w1, b1, w2, b2, w3, b3 = params
    in_size = w1.shape[0]
    h1, h2, out = w1.shape[1], w2.shape[1], w3.shape[1]
    h1p, h2p = _round_up(h1, LANE), _round_up(h2, LANE)
    outp = _round_up(out, SUBLANE)   # output width only needs sublane (8) alignment now

    w1p = jnp.zeros((in_size, h1p), jnp.bfloat16).at[:, :h1].set(w1.astype(jnp.bfloat16))
    b1p = jnp.zeros((1, h1p), jnp.float32).at[:, :h1].set(b1.reshape(1, -1).astype(jnp.float32))
    w2p = jnp.zeros((h1p, h2p), jnp.bfloat16).at[:h1, :h2].set(w2.astype(jnp.bfloat16))
    b2p = jnp.zeros((1, h2p), jnp.float32).at[:, :h2].set(b2.reshape(1, -1).astype(jnp.float32))
    # Layer 3 stored pre-transposed (out_pad8, h2p); bias as a column for broadcast over lanes.
    w3t = jnp.zeros((outp, h2p), jnp.bfloat16).at[:out, :h2].set(w3.astype(jnp.bfloat16).T)
    b3t = jnp.zeros((outp, 1), jnp.float32).at[:out, :].set(b3.reshape(-1, 1).astype(jnp.float32))
    return (w1p, b1p, w2p, b2p, w3t, b3t)


def qnetwork_forward(x, params, *, prepared_params=None, tile_b=None, use_pallas=None):
    """3-layer MLP forward. `params` are canonical f32 (W stored as (in, out), b as (1, out))."""
    batch, input_size = x.shape
    out_size = params[4].shape[1]

    if use_pallas is None:
        # Below ~256 rows a single small grid step is mostly launch/DMA overhead; plain XLA wins.
        use_pallas = batch >= 256
    if not use_pallas:
        return qnetwork_reference(x, params)

    if prepared_params is None:
        prepared_params = prepare_params(params)
    w1p, b1p, w2p, b2p, w3t, b3t = prepared_params
    out_pad = w3t.shape[0]
    h1_pad = w1p.shape[1]

    # --- Batch tiling: derive tile from batch to minimize padding; even tile count for v7x. ---
    target = 2048 if tile_b is None else max(int(tile_b), LANE)
    n_tiles = max(1, _cdiv(batch, target))
    if n_tiles > 1 and n_tiles % 2 == 1:
        n_tiles += 1                         # v7x: both TensorCores get whole tiles
    tile_b = _round_up(_cdiv(batch, n_tiles), LANE)   # mult of 128: bf16 x sublanes + lane-dense out
    batch_pad = tile_b * n_tiles

    x_p = x.astype(jnp.bfloat16)
    if batch_pad != batch:
        x_p = jnp.pad(x_p, ((0, batch_pad - batch), (0, 0)))

    # --- VMEM budget: actual footprint * 1.5 headroom, clamped well under v7x's 32 MiB default. ---
    vmem_bytes = (
        2 * tile_b * input_size * 2                       # double-buffered x blocks (bf16)
        + 2 * out_pad * tile_b * 4                        # double-buffered out blocks (f32)
        + 2 * (w1p.size + w2p.size + w3t.size) * 2        # resident weights (bf16, counted 2x)
        + 2 * (b1p.size + b2p.size + b3t.size) * 4        # biases (f32)
        + 4 * tile_b * h1_pad * 4                         # h1/h2/h2t f32 + bf16 temporaries
    )
    vmem_limit = int(min(max(vmem_bytes * 3 // 2, 4 * 1024 * 1024), 24 * 1024 * 1024))

    const_spec = lambda a: pl.BlockSpec(a.shape, lambda i: (0, 0))   # resident across the grid
    grid = (batch_pad // tile_b,)

    out_t = pl.pallas_call(
        qnet_kernel,
        out_shape=jax.ShapeDtypeStruct((out_pad, batch_pad), jnp.float32),
        grid=grid,
        in_specs=[
            pl.BlockSpec((tile_b, input_size), lambda i: (i, 0)),    # stream x by batch tile
            const_spec(w1p), const_spec(b1p),
            const_spec(w2p), const_spec(b2p),
            const_spec(w3t), const_spec(b3t),
        ],
        out_specs=pl.BlockSpec((out_pad, tile_b), lambda i: (0, i)),  # transposed, batch on lanes
        compiler_params=pltpu.CompilerParams(
            dimension_semantics=("parallel",),   # v7x: shard batch tiles across both TensorCores
            vmem_limit_bytes=vmem_limit,
        ),
    )(x_p, w1p, b1p, w2p, b2p, w3t, b3t)

    # Output was produced transposed; slice off row/column padding and return (batch, out_size).
    return out_t[:out_size, :batch].T


def init_params(key, input_size, output_size):
    """Deterministic synthetic init (shapes match the nn.Linear layers in QNetwork.__init__)."""
    k1, k2, k3, k4, k5, k6 = jax.random.split(key, 6)
    # Stored as (in, out); biases kept 2-D (1, out) for clean broadcasting in-kernel.
    w1 = jax.random.normal(k1, (input_size, 64), jnp.float32) * 0.1
    b1 = jax.random.normal(k2, (1, 64), jnp.float32) * 0.1
    w2 = jax.random.normal(k3, (64, 32), jnp.float32) * 0.1
    b2 = jax.random.normal(k4, (1, 32), jnp.float32) * 0.1
    w3 = jax.random.normal(k5, (32, output_size), jnp.float32) * 0.1
    b3 = jax.random.normal(k6, (1, output_size), jnp.float32) * 0.1
    return (w1, b1, w2, b2, w3, b3)


def qnetwork_reference(x, params):
    w1, b1, w2, b2, w3, b3 = params
    h1 = jnp.maximum(x @ w1 + b1, 0.0)
    h2 = jnp.maximum(h1 @ w2 + b2, 0.0)
    return h2 @ w3 + b3


if __name__ == "__main__":
    input_size = 16   # e.g. flattened game state
    output_size = 4   # e.g. number of actions
    batch = 8

    key = jax.random.PRNGKey(0)
    kx, kp = jax.random.split(key)
    x = jax.random.normal(kx, (batch, input_size), jnp.float32)
    params = init_params(kp, input_size, output_size)

    # Prepare (pad + bf16-cast) once, outside the per-call path.
    prepared = prepare_params(params)

    # Force the Pallas path to exercise the kernel even at this demo-sized batch.
    out = qnetwork_forward(x, params, prepared_params=prepared, use_pallas=True)
    out = jax.block_until_ready(out)

    ref = qnetwork_reference(x, params)
    assert out.shape == (batch, output_size)
    # Relaxed tolerance: kernel feeds bf16 operands to the MXU (f32 accumulation).
    assert jnp.allclose(out, ref, atol=2e-2, rtol=5e-2), (out, ref)

    print("KERNEL_OK")
</pallas_src>

<mosaic_0001>
module attributes {stable_mosaic.version = 11 : i64} {
  func.func @qnet_kernel(%arg0: i32, %arg1: memref<128x16xbf16, #tpu.memory_space<vmem>>, %arg2: memref<16x128xbf16, #tpu.memory_space<vmem>>, %arg3: memref<1x128xf32, #tpu.memory_space<vmem>>, %arg4: memref<128x128xbf16, #tpu.memory_space<vmem>>, %arg5: memref<1x128xf32, #tpu.memory_space<vmem>>, %arg6: memref<8x128xbf16, #tpu.memory_space<vmem>>, %arg7: memref<8x1xf32, #tpu.memory_space<vmem>>, %arg8: memref<8x128xf32, #tpu.memory_space<vmem>>) attributes {dimension_semantics = [#tpu.dimension_semantics<parallel>], iteration_bounds = array<i64: 1>, scalar_prefetch = 0 : i64, scratch_operands = 0 : i64, tpu.core_type = #tpu.core_type<tc>, window_params = [{transform_indices = @transform_0, window_bounds = array<i64: 128, 16>}, {pipeline_mode = #tpu.pipeline_mode<synchronous>, transform_indices = @transform_1, window_bounds = array<i64: 16, 128>}, {pipeline_mode = #tpu.pipeline_mode<synchronous>, transform_indices = @transform_2, window_bounds = array<i64: 1, 128>}, {pipeline_mode = #tpu.pipeline_mode<synchronous>, transform_indices = @transform_3, window_bounds = array<i64: 128, 128>}, {pipeline_mode = #tpu.pipeline_mode<synchronous>, transform_indices = @transform_4, window_bounds = array<i64: 1, 128>}, {pipeline_mode = #tpu.pipeline_mode<synchronous>, transform_indices = @transform_5, window_bounds = array<i64: 8, 128>}, {pipeline_mode = #tpu.pipeline_mode<synchronous>, transform_indices = @transform_6, window_bounds = array<i64: 8, 1>}, {transform_indices = @transform_7, window_bounds = array<i64: 8, 128>}]} {
    %c0 = arith.constant 0 : index
    %c0_0 = arith.constant 0 : index
    %0 = vector.load %arg1[%c0, %c0_0] : memref<128x16xbf16, #tpu.memory_space<vmem>>, vector<128x16xbf16>
    %c0_1 = arith.constant 0 : index
    %c0_2 = arith.constant 0 : index
    %1 = vector.load %arg2[%c0_1, %c0_2] : memref<16x128xbf16, #tpu.memory_space<vmem>>, vector<16x128xbf16>
    %cst = arith.constant dense<0.000000e+00> : vector<128x128xf32>
    %2 = tpu.matmul %0, %1, %cst {dimension_numbers = #tpu.dot_dimension_numbers<[1], [0], [0], [1], [0, 0, 1, 1], [], []>} : vector<128x16xbf16>, vector<16x128xbf16>, vector<128x128xf32> -> vector<128x128xf32>
    %c0_3 = arith.constant 0 : index
    %c0_4 = arith.constant 0 : index
    %3 = vector.load %arg3[%c0_3, %c0_4] : memref<1x128xf32, #tpu.memory_space<vmem>>, vector<1x128xf32>
    %4 = vector.broadcast %3 : vector<1x128xf32> to vector<128x128xf32>
    %5 = arith.addf %2, %4 : vector<128x128xf32>
    %cst_5 = arith.constant 0.000000e+00 : f32
    %6 = vector.broadcast %cst_5 : f32 to vector<128x128xf32>
    %7 = arith.maximumf %5, %6 : vector<128x128xf32>
    %8 = arith.truncf %7 : vector<128x128xf32> to vector<128x128xbf16>
    %c0_6 = arith.constant 0 : index
    %c0_7 = arith.constant 0 : index
    %9 = vector.load %arg4[%c0_6, %c0_7] : memref<128x128xbf16, #tpu.memory_space<vmem>>, vector<128x128xbf16>
    %cst_8 = arith.constant dense<0.000000e+00> : vector<128x128xf32>
    %10 = tpu.matmul %8, %9, %cst_8 {dimension_numbers = #tpu.dot_dimension_numbers<[1], [0], [0], [1], [0, 0, 1, 1], [], []>} : vector<128x128xbf16>, vector<128x128xbf16>, vector<128x128xf32> -> vector<128x128xf32>
    %c0_9 = arith.constant 0 : index
    %c0_10 = arith.constant 0 : index
    %11 = vector.load %arg5[%c0_9, %c0_10] : memref<1x128xf32, #tpu.memory_space<vmem>>, vector<1x128xf32>
    %12 = vector.broadcast %11 : vector<1x128xf32> to vector<128x128xf32>
    %13 = arith.addf %10, %12 : vector<128x128xf32>
    %cst_11 = arith.constant 0.000000e+00 : f32
    %14 = vector.broadcast %cst_11 : f32 to vector<128x128xf32>
    %15 = arith.maximumf %13, %14 : vector<128x128xf32>
    %16 = tpu.transpose %15, [1, 0] : vector<128x128xf32> -> vector<128x128xf32>
    %17 = arith.truncf %16 : vector<128x128xf32> to vector<128x128xbf16>
    %c0_12 = arith.constant 0 : index
    %c0_13 = arith.constant 0 : index
    %18 = vector.load %arg6[%c0_12, %c0_13] : memref<8x128xbf16, #tpu.memory_space<vmem>>, vector<8x128xbf16>
    %cst_14 = arith.constant dense<0.000000e+00> : vector<8x128xf32>
    %19 = tpu.matmul %18, %17, %cst_14 {dimension_numbers = #tpu.dot_dimension_numbers<[1], [0], [0], [1], [0, 0, 1, 1], [], []>} : vector<8x128xbf16>, vector<128x128xbf16>, vector<8x128xf32> -> vector<8x128xf32>
    %c0_15 = arith.constant 0 : index
    %c0_16 = arith.constant 0 : index
    %20 = vector.load %arg7[%c0_15, %c0_16] : memref<8x1xf32, #tpu.memory_space<vmem>>, vector<8x1xf32>
    %21 = vector.broadcast %20 : vector<8x1xf32> to vector<8x128xf32>
    %22 = arith.addf %19, %21 : vector<8x128xf32>
    %c0_17 = arith.constant 0 : index
    %c0_18 = arith.constant 0 : index
    %23 = vector.load %arg8[%c0_17, %c0_18] : memref<8x128xf32, #tpu.memory_space<vmem>>, vector<8x128xf32>
    tpu.vector_store %arg8[%c0_17, %c0_18], %22 {strides = array<i32>} : memref<8x128xf32, #tpu.memory_space<vmem>>, vector<8x128xf32>,
    return
  }
  func.func @transform_0(%arg0: i32) -> (i32, i32) {
    %c0_i32 = arith.constant 0 : i32
    %c0_i32_0 = arith.constant 0 : i32
    return %arg0, %c0_i32 : i32, i32
  }
  func.func @transform_1(%arg0: i32) -> (i32, i32) {
    %c0_i32 = arith.constant 0 : i32
    %c0_i32_0 = arith.constant 0 : i32
    %c0_i32_1 = arith.constant 0 : i32
    return %c0_i32, %c0_i32_0 : i32, i32
  }
  func.func @transform_2(%arg0: i32) -> (i32, i32) {
    %c0_i32 = arith.constant 0 : i32
    %c0_i32_0 = arith.constant 0 : i32
    %c0_i32_1 = arith.constant 0 : i32
    return %c0_i32, %c0_i32_0 : i32, i32
  }
  func.func @transform_3(%arg0: i32) -> (i32, i32) {
    %c0_i32 = arith.constant 0 : i32
    %c0_i32_0 = arith.constant 0 : i32
    %c0_i32_1 = arith.constant 0 : i32
    return %c0_i32, %c0_i32_0 : i32, i32
  }
  func.func @transform_4(%arg0: i32) -> (i32, i32) {
    %c0_i32 = arith.constant 0 : i32
    %c0_i32_0 = arith.constant 0 : i32
    %c0_i32_1 = arith.constant 0 : i32
    return %c0_i32, %c0_i32_0 : i32, i32
  }
  func.func @transform_5(%arg0: i32) -> (i32, i32) {
    %c0_i32 = arith.constant 0 : i32
    %c0_i32_0 = arith.constant 0 : i32
    %c0_i32_1 = arith.constant 0 : i32
    return %c0_i32, %c0_i32_0 : i32, i32
  }
  func.func @transform_6(%arg0: i32) -> (i32, i32) {
    %c0_i32 = arith.constant 0 : i32
    %c0_i32_0 = arith.constant 0 : i32
    %c0_i32_1 = arith.constant 0 : i32
    return %c0_i32, %c0_i32_0 : i32, i32
  }
  func.func @transform_7(%arg0: i32) -> (i32, i32) {
    %c0_i32 = arith.constant 0 : i32
    %c0_i32_0 = arith.constant 0 : i32
    return %c0_i32, %arg0 : i32, i32
  }
}

</mosaic_0001>

<llo_original>
// kernel: tpu_custom_call.1
$region0: #{tpu_custom_call.1}
  #allocation0 [shape = 'u32[]', space=smem, size = 0x4, offset = 0x4, fixed_abs, tag = 'smem constant byte address 0x4 - core index']
  #allocation1 [shape = 'u32[144,128]{1,0:T(1,128)}', space=vmem, size = 0x12000, scoped, tag = 'internal scratch']
  %s0 = inlined_call_operand.vmem [shape: bf16[128,16], index: 0, kind: input, shape index: {}]
  %s1 = inlined_call_operand.vmem [shape: bf16[16,128], index: 1, kind: input, shape index: {}]
  %s2 = inlined_call_operand.vmem [shape: f32[1,128], index: 2, kind: input, shape index: {}]
  %s3 = inlined_call_operand.vmem [shape: bf16[128,128], index: 3, kind: input, shape index: {}]
  %s4 = inlined_call_operand.vmem [shape: f32[1,128], index: 4, kind: input, shape index: {}]
  %s5 = inlined_call_operand.vmem [shape: bf16[8,128], index: 5, kind: input, shape index: {}]
  %s6 = inlined_call_operand.vmem [shape: f32[8,1], index: 6, kind: input, shape index: {}]
  %s7 = inlined_call_operand.hbm [shape: f32[8,128], index: 7, kind: output, shape index: {}]
  %s8 = sld [smem:[#allocation0]]
  $region38: #{tpu_custom_call.1} parent=0
    _
  %s10 = ssub.s32 1, %s8
  %s11 = scalar_select 0, %s10, %s8
  $region1: #{tpu_custom_call.1} parent=0
    #allocation2 [shape = 'u8[4096]{0}', space=vmem, size = 0x1000, scoped, tag = 'output window, operand 0, single buffered']
    #allocation3 [shape = 's32[1]{0}', space=sflag, size = 0x4, scoped, tag = 'scoped memory for tpu_custom_call.1']
    %12 = vsyncpa [#allocation3], 0
    // Predicated region
    $region2: #{tpu_custom_call.1} parent=1 // pred_check
      _
    $region3: #{tpu_custom_call.1} parent=1 // pred_check_branch
      %14 = sbr.rel (0) target = $region5
    $region4: #{tpu_custom_call.1} parent=1 // pred_region
      _
    $region5: #{tpu_custom_call.1} parent=1 // pred_fallthru
      _
    // Predicated region
    $region6: #{tpu_custom_call.1} parent=1 // pred_check
      _
    $region7: #{tpu_custom_call.1} parent=1 // pred_check_branch
      %16 = sbr.rel (0) target = $region9
    $region8: #{tpu_custom_call.1} parent=1 // pred_region
      _
    $region9: #{tpu_custom_call.1} parent=1 // pred_fallthru
      _
    // Predicated region
    $region10: #{tpu_custom_call.1} parent=1 // pred_check
      _
    $region11: #{tpu_custom_call.1} parent=1 // pred_check_branch
      %18 = sbr.rel (0) target = $region13
    $region12: #{tpu_custom_call.1} parent=1 // pred_region
      _
    $region13: #{tpu_custom_call.1} parent=1 // pred_fallthru
      _
    // Predicated region
    $region14: #{tpu_custom_call.1} parent=1 // pred_check
      _
    $region15: #{tpu_custom_call.1} parent=1 // pred_check_branch
      %20 = sbr.rel (0) target = $region17
    $region16: #{tpu_custom_call.1} parent=1 // pred_region
      _
    $region17: #{tpu_custom_call.1} parent=1 // pred_fallthru
      _
    // Predicated region
    $region18: #{tpu_custom_call.1} parent=1 // pred_check
      _
    $region19: #{tpu_custom_call.1} parent=1 // pred_check_branch
      %22 = sbr.rel (0) target = $region21
    $region20: #{tpu_custom_call.1} parent=1 // pred_region
      _
    $region21: #{tpu_custom_call.1} parent=1 // pred_fallthru
      _
    // Predicated region
    $region22: #{tpu_custom_call.1} parent=1 // pred_check
      _
    $region23: #{tpu_custom_call.1} parent=1 // pred_check_branch
      %24 = sbr.rel (0) target = $region25
    $region24: #{tpu_custom_call.1} parent=1 // pred_region
      _
    $region25: #{tpu_custom_call.1} parent=1 // pred_fallthru
      _
    // Predicated region
    $region26: #{tpu_custom_call.1} parent=1 // pred_check
      _
    $region27: #{tpu_custom_call.1} parent=1 // pred_check_branch
      %26 = sbr.rel (0) target = $region29
    $region28: #{tpu_custom_call.1} parent=1 // pred_region
      _
    $region29: #{tpu_custom_call.1} parent=1 // pred_fallthru
      _
    %v28 = vld [vmem:[%s0] sm:$0xf]
    %v29 = vld [vmem:[%s0 + $0x4] sm:$0xf]
    %v30 = vld [vmem:[%s0 + $0x8] sm:$0xf]
    %v31 = vld [vmem:[%s0 + $0xc] sm:$0xf]
    %v32 = vld [vmem:[%s0 + $0x10] sm:$0xf]
    %v33 = vld [vmem:[%s0 + $0x14] sm:$0xf]
    %v34 = vld [vmem:[%s0 + $0x18] sm:$0xf]
    %v35 = vld [vmem:[%s0 + $0x1c] sm:$0xf]
    %v36 = vld [vmem:[%s0 + $0x20] sm:$0xf]
    %v37 = vld [vmem:[%s0 + $0x24] sm:$0xf]
    %v38 = vld [vmem:[%s0 + $0x28] sm:$0xf]
    %v39 = vld [vmem:[%s0 + $0x2c] sm:$0xf]
    %v40 = vld [vmem:[%s0 + $0x30] sm:$0xf]
    %v41 = vld [vmem:[%s0 + $0x34] sm:$0xf]
    %v42 = vld [vmem:[%s0 + $0x38] sm:$0xf]
    %v43 = vld [vmem:[%s0 + $0x3c] sm:$0xf]
    %v44 = vld [vmem:[%s1] sm:$0xf]
    %v45 = vld [vmem:[%s1 + $0x4] sm:$0xf]
    %v46 = vld [vmem:[%s2] sm:$0x1]
    %v48 = vlaneseq
    %v49 = vshrl.u32 %v48, 7
    %v50 = vsub.s32 0, %v49
    %v51 = vrot.slane %v46, %v50
    %v69 = vunpack.c.l.b16 %v28
    %v70 = vunpack.c.l.b16 %v29
    %v71 = vunpack.c.l.b16 %v30
    %v72 = vunpack.c.l.b16 %v31
    %v73 = vunpack.c.l.b16 %v32
    %v74 = vunpack.c.l.b16 %v33
    %v75 = vunpack.c.l.b16 %v34
    %v76 = vunpack.c.l.b16 %v35
    %v77 = vunpack.c.l.b16 %v36
    %v78 = vunpack.c.l.b16 %v37
    %v79 = vunpack.c.l.b16 %v38
    %v80 = vunpack.c.l.b16 %v39
    %v81 = vunpack.c.l.b16 %v40
    %v82 = vunpack.c.l.b16 %v41
    %v83 = vunpack.c.l.b16 %v42
    %v84 = vunpack.c.l.b16 %v43
    %v85 = vpack.c.b16 %v70, %v69
    %v86 = vpack.c.b16 %v72, %v71
    %v87 = vpack.c.b16 %v74, %v73
    %v88 = vpack.c.b16 %v76, %v75
    %v89 = vpack.c.b16 %v78, %v77
    %v90 = vpack.c.b16 %v80, %v79
    %v91 = vpack.c.b16 %v82, %v81
    %v92 = vpack.c.b16 %v84, %v83
    %v95 = vunpack.c.l.b16 %v44
    %v96 = vunpack.c.l.b16 %v45
    %v97 = vpack.c.b16 %v96, %v95
    %vm99 = vcmask 130048
    %v101 = vsel %vm99, %v85, 0
    %v104 = vsel %vm99, %v86, 0
    %v107 = vsel %vm99, %v87, 0
    %v110 = vsel %vm99, %v88, 0
    %v113 = vsel %vm99, %v89, 0
    %v116 = vsel %vm99, %v90, 0
    %v119 = vsel %vm99, %v91, 0
    %v122 = vsel %vm99, %v92, 0
    %124 = vmatprep.subr.bf16.mxu0 0
    %125 = vmatpush1.bf16.msra.mxu0 0
    %126 = vmatprep.subr.bf16.mxu0 0
    %127 = vmatpush1.bf16.msra.mxu0 0
    %128 = vmatprep.subr.bf16.mxu0 0
    %129 = vmatpush1.bf16.msra.mxu0 0
    %130 = vmatprep.subr.bf16.mxu0 0
    %131 = vmatpush1.bf16.msra.mxu0 0
    %132 = vmatprep.subr.bf16.mxu0 0
    %133 = vmatpush1.bf16.msra.mxu0 0
    %134 = vmatprep.subr.bf16.mxu0 0
    %135 = vmatpush1.bf16.msra.mxu0 0
    %136 = vmatprep.subr.bf16.mxu0 0
    %137 = vmatpush1.bf16.msra.mxu0 0
    %138 = vmatprep.subr.bf16.mxu0 0
    %139 = vmatpush1.bf16.msra.mxu0 %v97
    %140 = vmatprep.subr.bf16.mxu0 0
    %141 = vmatpush2.bf16.msra.mxu0 0
    %142 = vmatprep.subr.bf16.mxu0 0
    %143 = vmatpush2.bf16.msra.mxu0 0
    %144 = vmatprep.subr.bf16.mxu0 0
    %145 = vmatpush2.bf16.msra.mxu0 0
    %146 = vmatprep.subr.bf16.mxu0 0
    %147 = vmatpush2.bf16.msra.mxu0 0
    %148 = vmatprep.subr.bf16.mxu0 0
    %149 = vmatpush2.bf16.msra.mxu0 0
    %150 = vmatprep.subr.bf16.mxu0 0
    %151 = vmatpush2.bf16.msra.mxu0 0
    %152 = vmatprep.subr.bf16.mxu0 0
    %153 = vmatpush2.bf16.msra.mxu0 0
    %154 = vmatprep.subr.bf16.mxu0 0
    %155 = vmatpush2.bf16.msra.mxu0 0
    %156 = vmatprep.mubr.bf16.mxu0 0
    %157 = vmatmul.mubr.bf16.gmra.mxu0 %v101
    %v158 = vpop.f32.mrf.mxu0
    %v159 = vadd.f32 %v51, %v158
    %v160 = vpop.f32.mrf.mxu0
    %v161 = vpop.f32.mrf.mxu0
    %v162 = vadd.f32 %v51, %v161
    %v163 = vpop.f32.mrf.mxu0
    %164 = vmatprep.mubr.bf16.mxu0 0
    %165 = vmatmul.mubr.bf16.gmra.mxu0 %v104
    %v166 = vpop.f32.mrf.mxu0
    %v167 = vadd.f32 %v51, %v166
    %v168 = vpop.f32.mrf.mxu0
    %v169 = vpop.f32.mrf.mxu0
    %v170 = vadd.f32 %v51, %v169
    %v171 = vpop.f32.mrf.mxu0
    %172 = vmatprep.mubr.bf16.mxu0 0
    %173 = vmatmul.mubr.bf16.gmra.mxu0 %v107
    %v174 = vpop.f32.mrf.mxu0
    %v175 = vadd.f32 %v51, %v174
    %v176 = vpop.f32.mrf.mxu0
    %v177 = vpop.f32.mrf.mxu0
    %v178 = vadd.f32 %v51, %v177
    %v179 = vpop.f32.mrf.mxu0
    %180 = vmatprep.mubr.bf16.mxu0 0
    %181 = vmatmul.mubr.bf16.gmra.mxu0 %v110
    %v182 = vpop.f32.mrf.mxu0
    %v183 = vadd.f32 %v51, %v182
    %v184 = vpop.f32.mrf.mxu0
    %v185 = vpop.f32.mrf.mxu0
    %v186 = vadd.f32 %v51, %v185
    %v187 = vpop.f32.mrf.mxu0
    %188 = vmatprep.mubr.bf16.mxu0 0
    %189 = vmatmul.mubr.bf16.gmra.mxu0 %v113
    %v190 = vpop.f32.mrf.mxu0
    %v191 = vadd.f32 %v51, %v190
    %v192 = vpop.f32.mrf.mxu0
    %v193 = vpop.f32.mrf.mxu0
    %v194 = vadd.f32 %v51, %v193
    %v195 = vpop.f32.mrf.mxu0
    %196 = vmatprep.mubr.bf16.mxu0 0
    %197 = vmatmul.mubr.bf16.gmra.mxu0 %v116
    %v198 = vpop.f32.mrf.mxu0
    %v199 = vadd.f32 %v51, %v198
    %v200 = vpop.f32.mrf.mxu0
    %v201 = vpop.f32.mrf.mxu0
    %v202 = vadd.f32 %v51, %v201
    %v203 = vpop.f32.mrf.mxu0
    %204 = vmatprep.mubr.bf16.mxu0 0
    %205 = vmatmul.mubr.bf16.gmra.mxu0 %v119
    %v206 = vpop.f32.mrf.mxu0
    %v207 = vadd.f32 %v51, %v206
    %v208 = vpop.f32.mrf.mxu0
    %v209 = vpop.f32.mrf.mxu0
    %v210 = vadd.f32 %v51, %v209
    %v211 = vpop.f32.mrf.mxu0
    %212 = vmatprep.mubr.bf16.mxu0 0
    %213 = vmatmul.mubr.bf16.gmra.mxu0 %v122
    %v214 = vpop.f32.mrf.mxu0
    %v215 = vadd.f32 %v51, %v214
    %v216 = vpop.f32.mrf.mxu0
    %v217 = vpop.f32.mrf.mxu0
    %v218 = vadd.f32 %v51, %v217
    %v219 = vpop.f32.mrf.mxu0
    %220 = vdwg.mxu0
    %v221 = vmax.f32 %v159, 0.0
    %v222 = vmax.f32 %v162, 0.0
    %v223 = vmax.f32 %v167, 0.0
    %v224 = vmax.f32 %v170, 0.0
    %v225 = vmax.f32 %v175, 0.0
    %v226 = vmax.f32 %v178, 0.0
    %v227 = vmax.f32 %v183, 0.0
    %v228 = vmax.f32 %v186, 0.0
    %v229 = vmax.f32 %v191, 0.0
    %v230 = vmax.f32 %v194, 0.0
    %v231 = vmax.f32 %v199, 0.0
    %v232 = vmax.f32 %v202, 0.0
    %v233 = vmax.f32 %v207, 0.0
    %v234 = vmax.f32 %v210, 0.0
    %v235 = vmax.f32 %v215, 0.0
    %v236 = vmax.f32 %v218, 0.0
    %v237 = vpack.c.bf16 %v222, %v221
    %v238 = vpack.c.bf16 %v224, %v223
    %v239 = vpack.c.bf16 %v226, %v225
    %v240 = vpack.c.bf16 %v228, %v227
    %v241 = vpack.c.bf16 %v230, %v229
    %v242 = vpack.c.bf16 %v232, %v231
    %v243 = vpack.c.bf16 %v234, %v233
    %v244 = vpack.c.bf16 %v236, %v235
    %v245 = vld [vmem:[%s3] sm:$0xf]
    %v246 = vld [vmem:[%s3 + $0x4] sm:$0xf]
    %v247 = vld [vmem:[%s3 + $0x8] sm:$0xf]
    %v248 = vld [vmem:[%s3 + $0xc] sm:$0xf]
    %v249 = vld [vmem:[%s3 + $0x10] sm:$0xf]
    %v250 = vld [vmem:[%s3 + $0x14] sm:$0xf]
    %v251 = vld [vmem:[%s3 + $0x18] sm:$0xf]
    %v252 = vld [vmem:[%s3 + $0x1c] sm:$0xf]
    %v253 = vld [vmem:[%s3 + $0x20] sm:$0xf]
    %v254 = vld [vmem:[%s3 + $0x24] sm:$0xf]
    %v255 = vld [vmem:[%s3 + $0x28] sm:$0xf]
    %v256 = vld [vmem:[%s3 + $0x2c] sm:$0xf]
    %v257 = vld [vmem:[%s3 + $0x30] sm:$0xf]
    %v258 = vld [vmem:[%s3 + $0x34] sm:$0xf]
    %v259 = vld [vmem:[%s3 + $0x38] sm:$0xf]
    %v260 = vld [vmem:[%s3 + $0x3c] sm:$0xf]
    %v261 = vld [vmem:[%s4] sm:$0x1]
    %v263 = vlaneseq
    %v264 = vshrl.u32 %v263, 7
    %v265 = vsub.s32 0, %v264
    %v266 = vrot.slane %v261, %v265
    %v284 = vunpack.c.l.b16 %v245
    %v285 = vunpack.c.l.b16 %v246
    %v286 = vunpack.c.l.b16 %v247
    %v287 = vunpack.c.l.b16 %v248
    %v288 = vunpack.c.l.b16 %v249
    %v289 = vunpack.c.l.b16 %v250
    %v290 = vunpack.c.l.b16 %v251
    %v291 = vunpack.c.l.b16 %v252
    %v292 = vunpack.c.l.b16 %v253
    %v293 = vunpack.c.l.b16 %v254
    %v294 = vunpack.c.l.b16 %v255
    %v295 = vunpack.c.l.b16 %v256
    %v296 = vunpack.c.l.b16 %v257
    %v297 = vunpack.c.l.b16 %v258
    %v298 = vunpack.c.l.b16 %v259
    %v299 = vunpack.c.l.b16 %v260
    %v300 = vpack.c.b16 %v285, %v284
    %v301 = vpack.c.b16 %v287, %v286
    %v302 = vpack.c.b16 %v289, %v288
    %v303 = vpack.c.b16 %v291, %v290
    %v304 = vpack.c.b16 %v293, %v292
    %v305 = vpack.c.b16 %v295, %v294
    %v306 = vpack.c.b16 %v297, %v296
    %v307 = vpack.c.b16 %v299, %v298
    %316 = vmatprep.subr.bf16.mxu0 0
    %317 = vmatpush1.bf16.msra.mxu0 %v307
    %318 = vmatprep.subr.bf16.mxu0 0
    %319 = vmatpush1.bf16.msra.mxu0 %v306
    %320 = vmatprep.subr.bf16.mxu0 0
    %321 = vmatpush1.bf16.msra.mxu0 %v305
    %322 = vmatprep.subr.bf16.mxu0 0
    %323 = vmatpush1.bf16.msra.mxu0 %v304
    %324 = vmatprep.subr.bf16.mxu0 0
    %325 = vmatpush1.bf16.msra.mxu0 %v303
    %326 = vmatprep.subr.bf16.mxu0 0
    %327 = vmatpush1.bf16.msra.mxu0 %v302
    %328 = vmatprep.subr.bf16.mxu0 0
    %329 = vmatpush1.bf16.msra.mxu0 %v301
    %330 = vmatprep.subr.bf16.mxu0 0
    %331 = vmatpush1.bf16.msra.mxu0 %v300
    %332 = vmatprep.subr.bf16.mxu0 0
    %333 = vmatpush2.bf16.msra.mxu0 0
    %334 = vmatprep.subr.bf16.mxu0 0
    %335 = vmatpush2.bf16.msra.mxu0 0
    %336 = vmatprep.subr.bf16.mxu0 0
    %337 = vmatpush2.bf16.msra.mxu0 0
    %338 = vmatprep.subr.bf16.mxu0 0
    %339 = vmatpush2.bf16.msra.mxu0 0
    %340 = vmatprep.subr.bf16.mxu0 0
    %341 = vmatpush2.bf16.msra.mxu0 0
    %342 = vmatprep.subr.bf16.mxu0 0
    %343 = vmatpush2.bf16.msra.mxu0 0
    %344 = vmatprep.subr.bf16.mxu0 0
    %345 = vmatpush2.bf16.msra.mxu0 0
    %346 = vmatprep.subr.bf16.mxu0 0
    %347 = vmatpush2.bf16.msra.mxu0 0
    %348 = vmatprep.mubr.bf16.mxu0 0
    %349 = vmatmul.mubr.bf16.gmra.mxu0 %v237
    %v350 = vpop.f32.mrf.mxu0
    %v351 = vadd.f32 %v266, %v350
    %v352 = vpop.f32.mrf.mxu0
    %v353 = vpop.f32.mrf.mxu0
    %v354 = vadd.f32 %v266, %v353
    %v355 = vpop.f32.mrf.mxu0
    %356 = vmatprep.mubr.bf16.mxu0 0
    %357 = vmatmul.mubr.bf16.gmra.mxu0 %v238
    %v358 = vpop.f32.mrf.mxu0
    %v359 = vadd.f32 %v266, %v358
    %v360 = vpop.f32.mrf.mxu0
    %v361 = vpop.f32.mrf.mxu0
    %v362 = vadd.f32 %v266, %v361
    %v363 = vpop.f32.mrf.mxu0
    %364 = vmatprep.mubr.bf16.mxu0 0
    %365 = vmatmul.mubr.bf16.gmra.mxu0 %v239
    %v366 = vpop.f32.mrf.mxu0
    %v367 = vadd.f32 %v266, %v366
    %v368 = vpop.f32.mrf.mxu0
    %v369 = vpop.f32.mrf.mxu0
    %v370 = vadd.f32 %v266, %v369
    %v371 = vpop.f32.mrf.mxu0
    %372 = vmatprep.mubr.bf16.mxu0 0
    %373 = vmatmul.mubr.bf16.gmra.mxu0 %v240
    %v374 = vpop.f32.mrf.mxu0
    %v375 = vadd.f32 %v266, %v374
    %v376 = vpop.f32.mrf.mxu0
    %v377 = vpop.f32.mrf.mxu0
    %v378 = vadd.f32 %v266, %v377
    %v379 = vpop.f32.mrf.mxu0
    %380 = vmatprep.mubr.bf16.mxu0 0
    %381 = vmatmul.mubr.bf16.gmra.mxu0 %v241
    %v382 = vpop.f32.mrf.mxu0
    %v383 = vadd.f32 %v266, %v382
    %v384 = vpop.f32.mrf.mxu0
    %v385 = vpop.f32.mrf.mxu0
    %v386 = vadd.f32 %v266, %v385
    %v387 = vpop.f32.mrf.mxu0
    %388 = vmatprep.mubr.bf16.mxu0 0
    %389 = vmatmul.mubr.bf16.gmra.mxu0 %v242
    %v390 = vpop.f32.mrf.mxu0
    %v391 = vadd.f32 %v266, %v390
    %v392 = vpop.f32.mrf.mxu0
    %v393 = vpop.f32.mrf.mxu0
    %v394 = vadd.f32 %v266, %v393
    %v395 = vpop.f32.mrf.mxu0
    %396 = vmatprep.mubr.bf16.mxu0 0
    %397 = vmatmul.mubr.bf16.gmra.mxu0 %v243
    %v398 = vpop.f32.mrf.mxu0
    %v399 = vadd.f32 %v266, %v398
    %v400 = vpop.f32.mrf.mxu0
    %v401 = vpop.f32.mrf.mxu0
    %v402 = vadd.f32 %v266, %v401
    %v403 = vpop.f32.mrf.mxu0
    %404 = vmatprep.mubr.bf16.mxu0 0
    %405 = vmatmul.mubr.bf16.gmra.mxu0 %v244
    %v406 = vpop.f32.mrf.mxu0
    %v407 = vadd.f32 %v266, %v406
    %v408 = vpop.f32.mrf.mxu0
    %v409 = vpop.f32.mrf.mxu0
    %v410 = vadd.f32 %v266, %v409
    %v411 = vpop.f32.mrf.mxu0
    %412 = vdwg.mxu0
    %v413 = vmax.f32 %v351, 0.0
    %v414 = vmax.f32 %v354, 0.0
    %v415 = vmax.f32 %v359, 0.0
    %v416 = vmax.f32 %v362, 0.0
    %v417 = vmax.f32 %v367, 0.0
    %v418 = vmax.f32 %v370, 0.0
    %v419 = vmax.f32 %v375, 0.0
    %v420 = vmax.f32 %v378, 0.0
    %v421 = vmax.f32 %v383, 0.0
    %v422 = vmax.f32 %v386, 0.0
    %v423 = vmax.f32 %v391, 0.0
    %v424 = vmax.f32 %v394, 0.0
    %v425 = vmax.f32 %v399, 0.0
    %v426 = vmax.f32 %v402, 0.0
    %v427 = vmax.f32 %v407, 0.0
    %v428 = vmax.f32 %v410, 0.0
    %429 = vxpose.xlu0.b32.start [1/16] %v413, 128
    %430 = vxpose.xlu0.b32.cont [2/16] %v414, 128
    %431 = vxpose.xlu0.b32.cont [3/16] %v415, 128
    %432 = vxpose.xlu0.b32.cont [4/16] %v416, 128
    %433 = vxpose.xlu0.b32.cont [5/16] %v417, 128
    %434 = vxpose.xlu0.b32.cont [6/16] %v418, 128
    %435 = vxpose.xlu0.b32.cont [7/16] %v419, 128
    %436 = vxpose.xlu0.b32.cont [8/16] %v420, 128
    %437 = vxpose.xlu0.b32.cont [9/16] %v421, 128
    %438 = vxpose.xlu0.b32.cont [10/16] %v422, 128
    %439 = vxpose.xlu0.b32.cont [11/16] %v423, 128
    %440 = vxpose.xlu0.b32.cont [12/16] %v424, 128
    %441 = vxpose.xlu0.b32.cont [13/16] %v425, 128
    %442 = vxpose.xlu0.b32.cont [14/16] %v426, 128
    %443 = vxpose.xlu0.b32.cont [15/16] %v427, 128
    %444 = vxpose.xlu0.b32.end [16/16] %v428, 128
    %v445 = vpop.trf.xlu0
    %v446 = vpop.trf.xlu0
    %v447 = vpop.trf.xlu0
    %v448 = vpop.trf.xlu0
    %v449 = vpop.trf.xlu0
    %v450 = vpop.trf.xlu0
    %v451 = vpop.trf.xlu0
    %v452 = vpop.trf.xlu0
    %v453 = vpop.trf.xlu0
    %v454 = vpop.trf.xlu0
    %v455 = vpop.trf.xlu0
    %v456 = vpop.trf.xlu0
    %v457 = vpop.trf.xlu0
    %v458 = vpop.trf.xlu0
    %v459 = vpop.trf.xlu0
    %v460 = vpop.trf.xlu0
    %v461 = vpack.c.bf16 %v446, %v445
    %v462 = vpack.c.bf16 %v448, %v447
    %v463 = vpack.c.bf16 %v450, %v449
    %v464 = vpack.c.bf16 %v452, %v451
    %v465 = vpack.c.bf16 %v454, %v453
    %v466 = vpack.c.bf16 %v456, %v455
    %v467 = vpack.c.bf16 %v458, %v457
    %v468 = vpack.c.bf16 %v460, %v459
    %v469 = vld [vmem:[%s5] sm:$0xf]
    %v470 = vld [vmem:[%s6] sm:$0xff]
    %472 = vset.pattern.permute.xlu0 0
    %473 = vperm.xlu0 %472, %v470
    %v474 = vpop.permute.xlu0 %473
    %476 = vmatprep.subr.bf16.mxu0 0
    %477 = vmatpush1.bf16.msra.mxu0 %v468
    %478 = vmatprep.subr.bf16.mxu0 0
    %479 = vmatpush1.bf16.msra.mxu0 %v467
    %480 = vmatprep.subr.bf16.mxu0 0
    %481 = vmatpush1.bf16.msra.mxu0 %v466
    %482 = vmatprep.subr.bf16.mxu0 0
    %483 = vmatpush1.bf16.msra.mxu0 %v465
    %484 = vmatprep.subr.bf16.mxu0 0
    %485 = vmatpush1.bf16.msra.mxu0 %v464
    %486 = vmatprep.subr.bf16.mxu0 0
    %487 = vmatpush1.bf16.msra.mxu0 %v463
    %488 = vmatprep.subr.bf16.mxu0 0
    %489 = vmatpush1.bf16.msra.mxu0 %v462
    %490 = vmatprep.subr.bf16.mxu0 0
    %491 = vmatpush1.bf16.msra.mxu0 %v461
    %492 = vmatprep.subr.bf16.mxu0 0
    %493 = vmatpush2.bf16.msra.mxu0 0
    %494 = vmatprep.subr.bf16.mxu0 0
    %495 = vmatpush2.bf16.msra.mxu0 0
    %496 = vmatprep.subr.bf16.mxu0 0
    %497 = vmatpush2.bf16.msra.mxu0 0
    %498 = vmatprep.subr.bf16.mxu0 0
    %499 = vmatpush2.bf16.msra.mxu0 0
    %500 = vmatprep.subr.bf16.mxu0 0
    %501 = vmatpush2.bf16.msra.mxu0 0
    %502 = vmatprep.subr.bf16.mxu0 0
    %503 = vmatpush2.bf16.msra.mxu0 0
    %504 = vmatprep.subr.bf16.mxu0 0
    %505 = vmatpush2.bf16.msra.mxu0 0
    %506 = vmatprep.subr.bf16.mxu0 0
    %507 = vmatpush2.bf16.msra.mxu0 0
    %508 = vmatprep.mubr.bf16.mxu0 0
    %509 = vmatmul.mubr.bf16.gmra.mxu0 %v469
    %v510 = vpop.f32.mrf.mxu0
    %v511 = vadd.f32 %v474, %v510
    %v512 = vpop.f32.mrf.mxu0
    %v513 = vpop.f32.mrf.mxu0
    %v514 = vpop.f32.mrf.mxu0
    %515 = vdwg.mxu0
    %516 = vst [vmem:[#allocation2] sm:$0xff] %v511
    // Predicated region
    $region30: #{tpu_custom_call.1} parent=1 // pred_check
      _
    $region31: #{tpu_custom_call.1} parent=1 // pred_check_branch
      %518 = sbr.rel (0) target = $region33
    $region32: #{tpu_custom_call.1} parent=1 // pred_region
      %s520 = ssub.s32 128, 128
      %521 = vsyncadd [#allocation3], %s520
      %s523 = sshll.u32 [#allocation2], 4
      %s524 = int_to_ptr.vmem [resolvable:$true] %s523
      %526 = dma.vmem_to_hbm [thread:$0]  %s524, 128, %s7, [#allocation3]
    $region33: #{tpu_custom_call.1} parent=1 // pred_fallthru
      _
    // Predicated region
    $region34: #{tpu_custom_call.1} parent=1 // pred_check
      _
    $region35: #{tpu_custom_call.1} parent=1 // pred_check_branch
      %528 = sbr.rel (0) target = $region37
    $region36: #{tpu_custom_call.1} parent=1 // pred_region
      %529 = dma.done [#allocation3], 128
    $region37: #{tpu_custom_call.1} parent=1 // pred_fallthru
      _
    %530 = vsyncpa [#allocation3], 1

</llo_original>
